<compile_context>
chip_gen: v5e
topology: v5e:2x2
jax: 0.10.0
libtpu: 0.0.40
codegen_flags: <defaults>
</compile_context>

<pallas_src>
import jax
import jax.numpy as jnp
from jax.experimental import pallas as pl
from jax.experimental.pallas import tpu as pltpu


# ----------------------------- Pallas kernel -------------------------------

def qdist_fused_kernel(x_ref, *refs):
    """refs = (W1f, b1f, W2f, b2f, ..., Woutf, boutf, out_ref).

    x_ref:    (B, in_size)   f32   -- shared input (obs||act)
    W_i ref:  fused weight slab, bf16
                layer 0:  (in_size, E*hid)      (member weights concatenated on cols)
                hidden :  (E*hid,  E*hid)       (block-diagonal)
                head   :  (E*hid,  E*Q)         (block-diagonal)
    b_i ref:  (1, E*d_out)   f32   -- fused bias row
    out_ref:  (B, E*Q)       f32   -- lane-dense output slab
    """
    out_ref = refs[-1]
    param_refs = refs[:-1]
    n_layers = len(param_refs) // 2

    h = x_ref[...]                                      # (B, in)  f32
    for i in range(n_layers):                           # small & static: unrolled at trace time
        w = param_refs[2 * i][...]                      # bf16 fused slab
        b = param_refs[2 * i + 1][...]                  # (1, d_out) f32
        h = jnp.dot(h.astype(jnp.bfloat16), w,
                    preferred_element_type=jnp.float32) + b
        if i < n_layers - 1:                            # ReLU on hidden layers only
            h = jnp.maximum(h, 0.0)
    out_ref[...] = h.astype(out_ref.dtype)              # (B, E*Q)


# --------------------------- wrapper-side fusion -----------------------------

def _block_diag(mats):
    """Block-diagonal stack of E equal-shaped matrices -> (E*d_in, E*d_out)."""
    E = len(mats)
    d_in, d_out = mats[0].shape
    out = jnp.zeros((E * d_in, E * d_out), mats[0].dtype)
    for e, m in enumerate(mats):
        out = out.at[e * d_in:(e + 1) * d_in, e * d_out:(e + 1) * d_out].set(m)
    return out


def pack_fused_params(weights, biases):
    """weights[i]: (E, d_in, d_out), biases[i]: (E, 1, d_out)
    -> per-layer fused weight slabs (bf16) and fused bias rows (f32).
    Member ordering is member-major along the fused output dim."""
    E = weights[0].shape[0]
    fused_w, fused_b = [], []
    for li, (w, b) in enumerate(zip(weights, biases)):
        if li == 0:
            # shared input: concatenate member weights along the output dim
            wf = jnp.concatenate([w[e] for e in range(E)], axis=-1)      # (d_in, E*d_out)
        else:
            wf = _block_diag([w[e] for e in range(E)])                   # (E*d_in, E*d_out)
        bf = b.reshape(1, -1)                                            # (1, E*d_out)
        fused_w.append(wf.astype(jnp.bfloat16))
        fused_b.append(bf.astype(jnp.float32))
    return fused_w, fused_b


# ------------------------------- forward ------------------------------------

def qdist_ensemble_forward(obs, act, weights, biases):
    """obs: (B, obs_dim), act: (B, action_dim)
    weights[i]: (E, d_in_i, d_out_i), biases[i]: (E, 1, d_out_i)
    returns: (E, B, num_quantiles)
    """
    x = jnp.concatenate([obs, act], axis=-1).astype(jnp.float32)   # (B, in_size)
    B = x.shape[0]
    E = weights[0].shape[0]
    Q = weights[-1].shape[-1]

    fused_w, fused_b = pack_fused_params(weights, biases)
    flat_params = []
    for w, b in zip(fused_w, fused_b):
        flat_params += [w, b]

    n_in = 1 + len(flat_params)
    out_fused = pl.pallas_call(
        qdist_fused_kernel,
        out_shape=jax.ShapeDtypeStruct((B, E * Q), jnp.float32),
        in_specs=[pl.BlockSpec(memory_space=pltpu.MemorySpace.VMEM)] * n_in,
        out_specs=pl.BlockSpec(memory_space=pltpu.MemorySpace.VMEM),
    )(x, *flat_params)

    # lane-dense (B, E*Q) slab -> module layout (E, B, Q); member-major columns.
    return out_fused.reshape(B, E, Q).transpose(1, 0, 2)


# --------------------------- deterministic init ------------------------------

def orthogonal_init(key, rows, cols, gain=1.0):
    """Semi-orthogonal matrix (matches torch.nn.init.orthogonal_ semantics)."""
    a = jax.random.normal(key, (max(rows, cols), min(rows, cols)), jnp.float32)
    q, r = jnp.linalg.qr(a)
    q = q * jnp.sign(jnp.diagonal(r))                # sign-fix for uniqueness
    if rows < cols:
        q = q.T
    return (gain * q[:rows, :cols]).astype(jnp.float32)


def make_params(key, ensemble_size, in_size, hid_size, num_layers, num_quantiles):
    """EnsembleLinearLayer params: weight (E, d_in, d_out), bias (E, 1, d_out) zeros."""
    dims = [in_size] + [hid_size] * num_layers + [num_quantiles]
    weights, biases = [], []
    for li in range(len(dims) - 1):
        d_in, d_out = dims[li], dims[li + 1]
        member_ws = []
        for m in range(ensemble_size):
            key, sub = jax.random.split(key)
            member_ws.append(orthogonal_init(sub, d_in, d_out, gain=1.0))
        weights.append(jnp.stack(member_ws, axis=0))           # (E, d_in, d_out)
        biases.append(jnp.zeros((ensemble_size, 1, d_out), jnp.float32))
    return weights, biases


# ------------------------------ reference -----------------------------------

def reference_forward(obs, act, weights, biases):
    x = jnp.concatenate([obs, act], axis=-1)         # (B, in)
    h = jnp.broadcast_to(x, (weights[0].shape[0],) + x.shape)   # (E, B, in)
    n = len(weights)
    for i, (w, b) in enumerate(zip(weights, biases)):
        h = jnp.einsum('ebi,eio->ebo', h, w) + b
        if i < n - 1:
            h = jnp.maximum(h, 0.0)
    return h


# --------------------------------- main --------------------------------------

if __name__ == "__main__":
    ensemble_size = 4
    obs_dim, action_dim = 16, 8
    hid_size = 32
    num_layers = 2
    num_quantiles = 8
    batch = 8

    key = jax.random.PRNGKey(0)
    k_obs, k_act, k_par = jax.random.split(key, 3)

    obs = jax.random.normal(k_obs, (batch, obs_dim), jnp.float32)
    act = jax.random.normal(k_act, (batch, action_dim), jnp.float32)

    weights, biases = make_params(
        k_par, ensemble_size, obs_dim + action_dim, hid_size, num_layers, num_quantiles)

    out = qdist_ensemble_forward(obs, act, weights, biases)
    out = jax.block_until_ready(out)

    ref = reference_forward(obs, act, weights, biases)
    assert out.shape == (ensemble_size, batch, num_quantiles), out.shape
    # bf16 matmul operands with f32 accumulation -> loosen tolerance vs. f32 reference.
    assert jnp.allclose(out, ref, atol=5e-2, rtol=5e-2), "mismatch vs reference"

    print("KERNEL_OK")
</pallas_src>

<mosaic_0001>
module attributes {stable_mosaic.version = 11 : i64} {
  func.func @qdist_fused_kernel(%arg0: memref<8x24xf32, #tpu.memory_space<vmem>>, %arg1: memref<24x128xbf16, #tpu.memory_space<vmem>>, %arg2: memref<1x128xf32, #tpu.memory_space<vmem>>, %arg3: memref<128x128xbf16, #tpu.memory_space<vmem>>, %arg4: memref<1x128xf32, #tpu.memory_space<vmem>>, %arg5: memref<128x32xbf16, #tpu.memory_space<vmem>>, %arg6: memref<1x32xf32, #tpu.memory_space<vmem>>, %arg7: memref<8x32xf32, #tpu.memory_space<vmem>>) attributes {dimension_semantics = [], scalar_prefetch = 0 : i64, scratch_operands = 0 : i64, tpu.core_type = #tpu.core_type<tc>} {
    %c0 = arith.constant 0 : index
    %c0_0 = arith.constant 0 : index
    %0 = vector.load %arg0[%c0, %c0_0] : memref<8x24xf32, #tpu.memory_space<vmem>>, vector<8x24xf32>
    %c0_1 = arith.constant 0 : index
    %c0_2 = arith.constant 0 : index
    %1 = vector.load %arg1[%c0_1, %c0_2] : memref<24x128xbf16, #tpu.memory_space<vmem>>, vector<24x128xbf16>
    %c0_3 = arith.constant 0 : index
    %c0_4 = arith.constant 0 : index
    %2 = vector.load %arg2[%c0_3, %c0_4] : memref<1x128xf32, #tpu.memory_space<vmem>>, vector<1x128xf32>
    %3 = arith.truncf %0 : vector<8x24xf32> to vector<8x24xbf16>
    %cst = arith.constant dense<0.000000e+00> : vector<8x128xf32>
    %4 = tpu.matmul %3, %1, %cst {dimension_numbers = #tpu.dot_dimension_numbers<[1], [0], [0], [1], [0, 0, 1, 1], [], []>} : vector<8x24xbf16>, vector<24x128xbf16>, vector<8x128xf32> -> vector<8x128xf32>
    %5 = vector.broadcast %2 : vector<1x128xf32> to vector<8x128xf32>
    %6 = arith.addf %4, %5 : vector<8x128xf32>
    %cst_5 = arith.constant 0.000000e+00 : f32
    %7 = vector.broadcast %cst_5 : f32 to vector<8x128xf32>
    %8 = arith.maximumf %6, %7 : vector<8x128xf32>
    %c0_6 = arith.constant 0 : index
    %c0_7 = arith.constant 0 : index
    %9 = vector.load %arg3[%c0_6, %c0_7] : memref<128x128xbf16, #tpu.memory_space<vmem>>, vector<128x128xbf16>
    %c0_8 = arith.constant 0 : index
    %c0_9 = arith.constant 0 : index
    %10 = vector.load %arg4[%c0_8, %c0_9] : memref<1x128xf32, #tpu.memory_space<vmem>>, vector<1x128xf32>
    %11 = arith.truncf %8 : vector<8x128xf32> to vector<8x128xbf16>
    %cst_10 = arith.constant dense<0.000000e+00> : vector<8x128xf32>
    %12 = tpu.matmul %11, %9, %cst_10 {dimension_numbers = #tpu.dot_dimension_numbers<[1], [0], [0], [1], [0, 0, 1, 1], [], []>} : vector<8x128xbf16>, vector<128x128xbf16>, vector<8x128xf32> -> vector<8x128xf32>
    %13 = vector.broadcast %10 : vector<1x128xf32> to vector<8x128xf32>
    %14 = arith.addf %12, %13 : vector<8x128xf32>
    %cst_11 = arith.constant 0.000000e+00 : f32
    %15 = vector.broadcast %cst_11 : f32 to vector<8x128xf32>
    %16 = arith.maximumf %14, %15 : vector<8x128xf32>
    %c0_12 = arith.constant 0 : index
    %c0_13 = arith.constant 0 : index
    %17 = vector.load %arg5[%c0_12, %c0_13] : memref<128x32xbf16, #tpu.memory_space<vmem>>, vector<128x32xbf16>
    %c0_14 = arith.constant 0 : index
    %c0_15 = arith.constant 0 : index
    %18 = vector.load %arg6[%c0_14, %c0_15] : memref<1x32xf32, #tpu.memory_space<vmem>>, vector<1x32xf32>
    %19 = arith.truncf %16 : vector<8x128xf32> to vector<8x128xbf16>
    %cst_16 = arith.constant dense<0.000000e+00> : vector<8x32xf32>
    %20 = tpu.matmul %19, %17, %cst_16 {dimension_numbers = #tpu.dot_dimension_numbers<[1], [0], [0], [1], [0, 0, 1, 1], [], []>} : vector<8x128xbf16>, vector<128x32xbf16>, vector<8x32xf32> -> vector<8x32xf32>
    %21 = vector.broadcast %18 : vector<1x32xf32> to vector<8x32xf32>
    %22 = arith.addf %20, %21 : vector<8x32xf32>
    %c0_17 = arith.constant 0 : index
    %c0_18 = arith.constant 0 : index
    %23 = vector.load %arg7[%c0_17, %c0_18] : memref<8x32xf32, #tpu.memory_space<vmem>>, vector<8x32xf32>
    tpu.vector_store %arg7[%c0_17, %c0_18], %22 {strides = array<i32>} : memref<8x32xf32, #tpu.memory_space<vmem>>, vector<8x32xf32>,
    return
  }
}

</mosaic_0001>

<llo_original>
// kernel: tpu_custom_call.1
$region0: #{tpu_custom_call.1}
  #allocation0 [shape = 'u32[]', space=smem, size = 0x4, offset = 0x4, fixed_abs, tag = 'smem constant byte address 0x4 - core index']
  #allocation1 [shape = 'u32[72,128]{1,0:T(1,128)}', space=vmem, size = 0x9000, scoped, tag = 'internal scratch']
  %s0 = inlined_call_operand.hbm [shape: f32[8,24], index: 0, kind: input, shape index: {}]
  %s1 = inlined_call_operand.vmem [shape: bf16[24,128], index: 1, kind: input, shape index: {}]
  %s2 = inlined_call_operand.vmem [shape: f32[1,128], index: 2, kind: input, shape index: {}]
  %s3 = inlined_call_operand.vmem [shape: bf16[128,128], index: 3, kind: input, shape index: {}]
  %s4 = inlined_call_operand.vmem [shape: f32[1,128], index: 4, kind: input, shape index: {}]
  %s5 = inlined_call_operand.vmem [shape: bf16[128,32], index: 5, kind: input, shape index: {}]
  %s6 = inlined_call_operand.vmem [shape: f32[1,32], index: 6, kind: input, shape index: {}]
  %s7 = inlined_call_operand.hbm [shape: f32[8,32], index: 7, kind: output, shape index: {}]
  %s8 = sld [smem:[#allocation0]]
  $region42: #{tpu_custom_call.1} parent=0
    _
  %s10 = ssub.s32 1, %s8
  %s11 = scalar_select 0, %s10, %s8
  $region1: #{tpu_custom_call.1} parent=0
    #allocation2 [shape = 'u8[4096]{0}', space=vmem, size = 0x1000, scoped, tag = 'input window, operand 0, single buffered']
    #allocation3 [shape = 's32[1]{0}', space=sflag, size = 0x4, scoped, tag = 'scoped memory for tpu_custom_call.1']
    #allocation4 [shape = 's32[1]{0}', space=sflag, size = 0x4, scoped, tag = 'scoped memory for tpu_custom_call.1']
    #allocation5 [shape = 'u8[4096]{0}', space=vmem, size = 0x1000, scoped, tag = 'output window, operand 0, single buffered']
    %12 = vsyncpa [#allocation3], 0
    %13 = vsyncpa [#allocation4], 0
    // Predicated region
    $region2: #{tpu_custom_call.1} parent=1 // pred_check
      _
    $region3: #{tpu_custom_call.1} parent=1 // pred_check_branch
      %15 = sbr.rel (0) target = $region5
    $region4: #{tpu_custom_call.1} parent=1 // pred_region
      %17 = vsyncadd [#allocation3], 0
      %s19 = sshll.u32 %s0, 4
      %s20 = int_to_ptr.hbm [resolvable:$true] %s19
      %s21 = sshll.u32 [#allocation2], 4
      %s22 = int_to_ptr.vmem [resolvable:$true] %s21
      %24 = dma.hbm_to_vmem [thread:$0]  %s20, 128, %s22, [#allocation3]
    $region5: #{tpu_custom_call.1} parent=1 // pred_fallthru
      _
    // Predicated region
    $region6: #{tpu_custom_call.1} parent=1 // pred_check
      _
    $region7: #{tpu_custom_call.1} parent=1 // pred_check_branch
      %26 = sbr.rel (0) target = $region9
    $region8: #{tpu_custom_call.1} parent=1 // pred_region
      _
    $region9: #{tpu_custom_call.1} parent=1 // pred_fallthru
      _
    // Predicated region
    $region10: #{tpu_custom_call.1} parent=1 // pred_check
      _
    $region11: #{tpu_custom_call.1} parent=1 // pred_check_branch
      %28 = sbr.rel (0) target = $region13
    $region12: #{tpu_custom_call.1} parent=1 // pred_region
      _
    $region13: #{tpu_custom_call.1} parent=1 // pred_fallthru
      _
    // Predicated region
    $region14: #{tpu_custom_call.1} parent=1 // pred_check
      _
    $region15: #{tpu_custom_call.1} parent=1 // pred_check_branch
      %30 = sbr.rel (0) target = $region17
    $region16: #{tpu_custom_call.1} parent=1 // pred_region
      _
    $region17: #{tpu_custom_call.1} parent=1 // pred_fallthru
      _
    // Predicated region
    $region18: #{tpu_custom_call.1} parent=1 // pred_check
      _
    $region19: #{tpu_custom_call.1} parent=1 // pred_check_branch
      %32 = sbr.rel (0) target = $region21
    $region20: #{tpu_custom_call.1} parent=1 // pred_region
      _
    $region21: #{tpu_custom_call.1} parent=1 // pred_fallthru
      _
    // Predicated region
    $region22: #{tpu_custom_call.1} parent=1 // pred_check
      _
    $region23: #{tpu_custom_call.1} parent=1 // pred_check_branch
      %34 = sbr.rel (0) target = $region25
    $region24: #{tpu_custom_call.1} parent=1 // pred_region
      _
    $region25: #{tpu_custom_call.1} parent=1 // pred_fallthru
      _
    // Predicated region
    $region26: #{tpu_custom_call.1} parent=1 // pred_check
      _
    $region27: #{tpu_custom_call.1} parent=1 // pred_check_branch
      %36 = sbr.rel (0) target = $region29
    $region28: #{tpu_custom_call.1} parent=1 // pred_region
      _
    $region29: #{tpu_custom_call.1} parent=1 // pred_fallthru
      _
    // Predicated region
    $region30: #{tpu_custom_call.1} parent=1 // pred_check
      _
    $region31: #{tpu_custom_call.1} parent=1 // pred_check_branch
      %38 = sbr.rel (0) target = $region33
    $region32: #{tpu_custom_call.1} parent=1 // pred_region
      %40 = dma.done [#allocation3], 128
    $region33: #{tpu_custom_call.1} parent=1 // pred_fallthru
      _
    %v42 = vld [vmem:[#allocation2] sm:$0xff]
    %v43 = vld [vmem:[%s1] sm:$0xf]
    %v44 = vld [vmem:[%s1 + $0x4] sm:$0xf]
    %v45 = vld [vmem:[%s1 + $0x8] sm:$0xf]
    %v46 = vld [vmem:[%s2] sm:$0x1]
    %v47 = vpack.c.bf16 %v42, %v42
    %v49 = vperm.slane %v46, 0
    %v54 = vunpack.c.l.b16 %v43
    %v55 = vunpack.c.l.b16 %v44
    %v56 = vunpack.c.l.b16 %v45
    %v57 = vpack.c.b16 %v55, %v54
    %v58 = vpack.c.b16 %v56, %v56
    %vm60 = vcmask 195584
    %v62 = vsel %vm60, %v47, 0
    %vm64 = vcmask 1043456
    %v66 = vsel %vm64, %v58, 0
    %68 = vmatpush.bf16.msra.mxu0 0
    %69 = vmatpush.bf16.msra.mxu0 0
    %70 = vmatpush.bf16.msra.mxu0 0
    %71 = vmatpush.bf16.msra.mxu0 0
    %72 = vmatpush.bf16.msra.mxu0 0
    %73 = vmatpush.bf16.msra.mxu0 0
    %74 = vmatpush.bf16.msra.mxu0 %v66
    %75 = vmatpush.bf16.msra.mxu0 %v57
    %76 = vmatmul.bf16.gmra.mxu0 %v62
    %v77 = vpop.f32.mrf.mxu0
    %v78 = vadd.f32 %v49, %v77
    %v79 = vpop.f32.mrf.mxu0
    %80 = vdwg.mxu0
    %v81 = vmax.f32 %v78, 0.0
    %v82 = vld [vmem:[%s3] sm:$0xf]
    %v83 = vld [vmem:[%s3 + $0x4] sm:$0xf]
    %v84 = vld [vmem:[%s3 + $0x8] sm:$0xf]
    %v85 = vld [vmem:[%s3 + $0xc] sm:$0xf]
    %v86 = vld [vmem:[%s3 + $0x10] sm:$0xf]
    %v87 = vld [vmem:[%s3 + $0x14] sm:$0xf]
    %v88 = vld [vmem:[%s3 + $0x18] sm:$0xf]
    %v89 = vld [vmem:[%s3 + $0x1c] sm:$0xf]
    %v90 = vld [vmem:[%s3 + $0x20] sm:$0xf]
    %v91 = vld [vmem:[%s3 + $0x24] sm:$0xf]
    %v92 = vld [vmem:[%s3 + $0x28] sm:$0xf]
    %v93 = vld [vmem:[%s3 + $0x2c] sm:$0xf]
    %v94 = vld [vmem:[%s3 + $0x30] sm:$0xf]
    %v95 = vld [vmem:[%s3 + $0x34] sm:$0xf]
    %v96 = vld [vmem:[%s3 + $0x38] sm:$0xf]
    %v97 = vld [vmem:[%s3 + $0x3c] sm:$0xf]
    %v98 = vld [vmem:[%s4] sm:$0x1]
    %v99 = vpack.c.bf16 %v81, %v81
    %v101 = vperm.slane %v98, 0
    %v119 = vunpack.c.l.b16 %v82
    %v120 = vunpack.c.l.b16 %v83
    %v121 = vunpack.c.l.b16 %v84
    %v122 = vunpack.c.l.b16 %v85
    %v123 = vunpack.c.l.b16 %v86
    %v124 = vunpack.c.l.b16 %v87
    %v125 = vunpack.c.l.b16 %v88
    %v126 = vunpack.c.l.b16 %v89
    %v127 = vunpack.c.l.b16 %v90
    %v128 = vunpack.c.l.b16 %v91
    %v129 = vunpack.c.l.b16 %v92
    %v130 = vunpack.c.l.b16 %v93
    %v131 = vunpack.c.l.b16 %v94
    %v132 = vunpack.c.l.b16 %v95
    %v133 = vunpack.c.l.b16 %v96
    %v134 = vunpack.c.l.b16 %v97
    %v135 = vpack.c.b16 %v120, %v119
    %v136 = vpack.c.b16 %v122, %v121
    %v137 = vpack.c.b16 %v124, %v123
    %v138 = vpack.c.b16 %v126, %v125
    %v139 = vpack.c.b16 %v128, %v127
    %v140 = vpack.c.b16 %v130, %v129
    %v141 = vpack.c.b16 %v132, %v131
    %v142 = vpack.c.b16 %v134, %v133
    %151 = vmatpush.bf16.msra.mxu0 %v142
    %152 = vmatpush.bf16.msra.mxu0 %v141
    %153 = vmatpush.bf16.msra.mxu0 %v140
    %154 = vmatpush.bf16.msra.mxu0 %v139
    %155 = vmatpush.bf16.msra.mxu0 %v138
    %156 = vmatpush.bf16.msra.mxu0 %v137
    %157 = vmatpush.bf16.msra.mxu0 %v136
    %158 = vmatpush.bf16.msra.mxu0 %v135
    %159 = vmatmul.bf16.gmra.mxu0 %v99
    %v160 = vpop.f32.mrf.mxu0
    %v161 = vadd.f32 %v101, %v160
    %v162 = vpop.f32.mrf.mxu0
    %163 = vdwg.mxu0
    %v164 = vmax.f32 %v161, 0.0
    %v165 = vld [vmem:[%s5] sm:$0xf]
    %v166 = vld [vmem:[%s5 + $0x4] sm:$0xf]
    %v167 = vld [vmem:[%s5 + $0x8] sm:$0xf]
    %v168 = vld [vmem:[%s5 + $0xc] sm:$0xf]
    %v169 = vld [vmem:[%s5 + $0x10] sm:$0xf]
    %v170 = vld [vmem:[%s5 + $0x14] sm:$0xf]
    %v171 = vld [vmem:[%s5 + $0x18] sm:$0xf]
    %v172 = vld [vmem:[%s5 + $0x1c] sm:$0xf]
    %v173 = vld [vmem:[%s5 + $0x20] sm:$0xf]
    %v174 = vld [vmem:[%s5 + $0x24] sm:$0xf]
    %v175 = vld [vmem:[%s5 + $0x28] sm:$0xf]
    %v176 = vld [vmem:[%s5 + $0x2c] sm:$0xf]
    %v177 = vld [vmem:[%s5 + $0x30] sm:$0xf]
    %v178 = vld [vmem:[%s5 + $0x34] sm:$0xf]
    %v179 = vld [vmem:[%s5 + $0x38] sm:$0xf]
    %v180 = vld [vmem:[%s5 + $0x3c] sm:$0xf]
    %v181 = vld [vmem:[%s6] sm:$0x1]
    %v182 = vpack.c.bf16 %v164, %v164
    %v184 = vperm.slane %v181, 0
    %v202 = vunpack.c.l.b16 %v165
    %v203 = vunpack.c.l.b16 %v166
    %v204 = vunpack.c.l.b16 %v167
    %v205 = vunpack.c.l.b16 %v168
    %v206 = vunpack.c.l.b16 %v169
    %v207 = vunpack.c.l.b16 %v170
    %v208 = vunpack.c.l.b16 %v171
    %v209 = vunpack.c.l.b16 %v172
    %v210 = vunpack.c.l.b16 %v173
    %v211 = vunpack.c.l.b16 %v174
    %v212 = vunpack.c.l.b16 %v175
    %v213 = vunpack.c.l.b16 %v176
    %v214 = vunpack.c.l.b16 %v177
    %v215 = vunpack.c.l.b16 %v178
    %v216 = vunpack.c.l.b16 %v179
    %v217 = vunpack.c.l.b16 %v180
    %v218 = vpack.c.b16 %v203, %v202
    %v219 = vpack.c.b16 %v205, %v204
    %v220 = vpack.c.b16 %v207, %v206
    %v221 = vpack.c.b16 %v209, %v208
    %v222 = vpack.c.b16 %v211, %v210
    %v223 = vpack.c.b16 %v213, %v212
    %v224 = vpack.c.b16 %v215, %v214
    %v225 = vpack.c.b16 %v217, %v216
    %234 = vmatpush.bf16.msra.mxu0 %v225
    %235 = vmatpush.bf16.msra.mxu0 %v224
    %236 = vmatpush.bf16.msra.mxu0 %v223
    %237 = vmatpush.bf16.msra.mxu0 %v222
    %238 = vmatpush.bf16.msra.mxu0 %v221
    %239 = vmatpush.bf16.msra.mxu0 %v220
    %240 = vmatpush.bf16.msra.mxu0 %v219
    %241 = vmatpush.bf16.msra.mxu0 %v218
    %242 = vmatmul.bf16.gmra.mxu0 %v182
    %v243 = vpop.f32.mrf.mxu0
    %v244 = vadd.f32 %v184, %v243
    %v245 = vpop.f32.mrf.mxu0
    %246 = vdwg.mxu0
    %vm247 = vcmask 261120
    %248 = vst.msk [vmem:[#allocation5] sm:$0xff] %vm247, %v244
    // Predicated region
    $region34: #{tpu_custom_call.1} parent=1 // pred_check
      _
    $region35: #{tpu_custom_call.1} parent=1 // pred_check_branch
      %250 = sbr.rel (0) target = $region37
    $region36: #{tpu_custom_call.1} parent=1 // pred_region
      %252 = vsyncadd [#allocation4], 0
      %s254 = sshll.u32 [#allocation5], 4
      %s255 = int_to_ptr.vmem [resolvable:$true] %s254
      %s256 = sshll.u32 %s7, 4
      %s257 = int_to_ptr.hbm [resolvable:$true] %s256
      %259 = dma.vmem_to_hbm [thread:$0]  %s255, 128, %s257, [#allocation4]
    $region37: #{tpu_custom_call.1} parent=1 // pred_fallthru
      _
    // Predicated region
    $region38: #{tpu_custom_call.1} parent=1 // pred_check
      _
    $region39: #{tpu_custom_call.1} parent=1 // pred_check_branch
      %261 = sbr.rel (0) target = $region41
    $region40: #{tpu_custom_call.1} parent=1 // pred_region
      %263 = dma.done [#allocation4], 128
    $region41: #{tpu_custom_call.1} parent=1 // pred_fallthru
      _
    %264 = vsyncpa [#allocation3], 1
    %265 = vsyncpa [#allocation4], 1

</llo_original>
